<compile_context>
chip_gen: v6e
topology: v6e:2x2x1
jax: 0.10.0
libtpu: 0.0.40
codegen_flags: <defaults>
</compile_context>

<pallas_src>
import functools

import jax
import jax.numpy as jnp
from jax.experimental import pallas as pl
from jax.experimental.pallas import tpu as pltpu


def _round_up(n, m):
    return ((n + m - 1) // m) * m


def mlp_kernel(xT_ref, w1_ref, b1_ref, w2_ref, b2_ref, w3_ref, b3_ref, o_ref):
    xT = xT_ref[...]                                                    # (1, TB) f32

    # fc1: K=1 contraction on the MXU (outer product broadcast for free).
    h1 = jnp.dot(w1_ref[...], xT, preferred_element_type=jnp.float32)  # (128, TB)
    # Fused bias + ReLU + bf16 cast in a single elementwise traversal.
    h1 = jnp.maximum(h1 + b1_ref[...], 0.0).astype(jnp.bfloat16)

    # fc2: the only real contraction (128x128), bf16 inputs, f32 accumulate.
    h2 = jnp.dot(w2_ref[...], h1, preferred_element_type=jnp.float32)  # (128, TB)
    h2 = jnp.maximum(h2 + b2_ref[...], 0.0)

    # fc3: N=1 contraction on the MXU (no VPU multiply, no XLU sublane reduce).
    out = jnp.dot(w3_ref[...], h2, preferred_element_type=jnp.float32)  # (1, TB)
    o_ref[...] = (out + b3_ref[...]).astype(o_ref.dtype)


@functools.partial(jax.jit, static_argnames=("max_tile",))
def net_forward(x, params, *, max_tile=8192):
    """x: (B, 1) float32. params in PyTorch layout (weight: (out, in), bias: (out,))."""
    B = x.shape[0]

    # Weight prep for the transposed formulation (done once, outside kernel).
    w1 = params["w1"]                               # (128, 1) f32
    b1 = params["b1"].reshape(128, 1)
    w2 = params["w2"].astype(jnp.bfloat16)          # (128, 128) bf16 for the MXU
    b2 = params["b2"].reshape(128, 1)
    w3r = params["w3"].reshape(1, 128)              # fc3 weight as a row, f32
    b3 = params["b3"].reshape(1, 1)

    # Batch tile: lane-dense (multiple of 128).  Aim for >=2 grid steps so the
    # v7x megacore ("parallel" grid axis) can shard across both TensorCores,
    # then cap so (128, TB) f32 temporaries stay well inside the VMEM limit.
    Bp128 = _round_up(B, 128)
    TB = min(max_tile, max(128, _round_up((Bp128 + 1) // 2, 128)))
    Bp = _round_up(B, TB)
    xT = jnp.pad(x.reshape(1, B), ((0, 0), (0, Bp - B)))          # (1, Bp) f32

    grid = (Bp // TB,)

    def full(a):
        # Constant index_map -> weights/biases stay VMEM-resident across steps.
        return pl.BlockSpec(a.shape, lambda i: (0,) * a.ndim)

    flops = 2 * Bp * (128 * 1 + 128 * 128 + 128 * 1)
    bytes_accessed = (
        Bp * 4 + Bp * 4                                  # xT in, out
        + (128 * 1 + 128 + 128 + 128 + 1) * 4            # w1, b1, b2, w3 row, b3 (f32)
        + 128 * 128 * 2                                  # w2 (bf16)
    )

    out = pl.pallas_call(
        mlp_kernel,
        out_shape=jax.ShapeDtypeStruct((1, Bp), jnp.float32),
        grid=grid,
        in_specs=[
            pl.BlockSpec((1, TB), lambda i: (0, i)),      # xT tile (lane-dense)
            full(w1), full(b1), full(w2), full(b2), full(w3r), full(b3),
        ],
        out_specs=pl.BlockSpec((1, TB), lambda i: (0, i)),  # lane-dense stores
        compiler_params=pltpu.CompilerParams(
            dimension_semantics=("parallel",),            # megacore on v7x
            vmem_limit_bytes=32 * 1024 * 1024,            # covers TB=8192 on v5e too
        ),
        cost_estimate=pl.CostEstimate(
            flops=flops, transcendentals=0, bytes_accessed=bytes_accessed),
    )(xT, w1, b1, w2, b2, w3r, b3)

    return out[0, :B].reshape(B, 1)


def init_params(key):
    """Deterministic init mimicking nn.Linear's U(-1/sqrt(fan_in), 1/sqrt(fan_in)),
    stored in PyTorch layout: weight (out, in), bias (out,)."""
    k1, k2, k3, k4, k5, k6 = jax.random.split(key, 6)

    def lin(kw, kb, fan_in, fan_out):
        bound = 1.0 / float(fan_in) ** 0.5
        w = jax.random.uniform(kw, (fan_out, fan_in), jnp.float32, -bound, bound)
        b = jax.random.uniform(kb, (fan_out,), jnp.float32, -bound, bound)
        return w, b

    w1, b1 = lin(k1, k2, 1, 128)
    w2, b2 = lin(k3, k4, 128, 128)
    w3, b3 = lin(k5, k6, 128, 1)
    return {"w1": w1, "b1": b1, "w2": w2, "b2": b2, "w3": w3, "b3": b3}


if __name__ == "__main__":
    key = jax.random.PRNGKey(0)
    kx, kp = jax.random.split(key)

    # NOTE: at B this tiny the call is launch-latency bound; the kernel is
    # structured (batch grid + lane-dense I/O + VMEM-resident weights) so it
    # scales to batches in the tens of thousands.
    B = 8
    x = jax.random.normal(kx, (B, 1), jnp.float32)
    params = init_params(kp)

    out = net_forward(x, params)
    out = jax.block_until_ready(out)

    # Pure-JAX f32 reference (kernel uses bf16 for fc2 -> loose tolerance).
    ref = jnp.maximum(x @ params["w1"].T + params["b1"], 0.0)
    ref = jnp.maximum(ref @ params["w2"].T + params["b2"], 0.0)
    ref = ref @ params["w3"].T + params["b3"]

    assert out.shape == (B, 1)
    assert jnp.allclose(out, ref, atol=1e-2, rtol=1e-2), (
        f"max abs err {jnp.max(jnp.abs(out - ref))}")

    print("KERNEL_OK")
</pallas_src>

<mosaic_0001>
module attributes {stable_mosaic.version = 11 : i64} {
  func.func @mlp_kernel(%arg0: i32, %arg1: memref<1x128xf32, #tpu.memory_space<vmem>>, %arg2: memref<128x1xf32, #tpu.memory_space<vmem>>, %arg3: memref<128x1xf32, #tpu.memory_space<vmem>>, %arg4: memref<128x128xbf16, #tpu.memory_space<vmem>>, %arg5: memref<128x1xf32, #tpu.memory_space<vmem>>, %arg6: memref<1x128xf32, #tpu.memory_space<vmem>>, %arg7: memref<1x1xf32, #tpu.memory_space<vmem>>, %arg8: memref<1x128xf32, #tpu.memory_space<vmem>>) attributes {dimension_semantics = [#tpu.dimension_semantics<parallel>], iteration_bounds = array<i64: 1>, scalar_prefetch = 0 : i64, scratch_operands = 0 : i64, tpu.core_type = #tpu.core_type<tc>, window_params = [{transform_indices = @transform_0, window_bounds = array<i64: 1, 128>}, {pipeline_mode = #tpu.pipeline_mode<synchronous>, transform_indices = @transform_1, window_bounds = array<i64: 128, 1>}, {pipeline_mode = #tpu.pipeline_mode<synchronous>, transform_indices = @transform_2, window_bounds = array<i64: 128, 1>}, {pipeline_mode = #tpu.pipeline_mode<synchronous>, transform_indices = @transform_3, window_bounds = array<i64: 128, 128>}, {pipeline_mode = #tpu.pipeline_mode<synchronous>, transform_indices = @transform_4, window_bounds = array<i64: 128, 1>}, {pipeline_mode = #tpu.pipeline_mode<synchronous>, transform_indices = @transform_5, window_bounds = array<i64: 1, 128>}, {pipeline_mode = #tpu.pipeline_mode<synchronous>, transform_indices = @transform_6, window_bounds = array<i64: 1, 1>}, {transform_indices = @transform_7, window_bounds = array<i64: 1, 128>}]} {
    %c0 = arith.constant 0 : index
    %c0_0 = arith.constant 0 : index
    %0 = vector.load %arg1[%c0, %c0_0] : memref<1x128xf32, #tpu.memory_space<vmem>>, vector<1x128xf32>
    %c0_1 = arith.constant 0 : index
    %c0_2 = arith.constant 0 : index
    %1 = vector.load %arg2[%c0_1, %c0_2] : memref<128x1xf32, #tpu.memory_space<vmem>>, vector<128x1xf32>
    %cst = arith.constant dense<0.000000e+00> : vector<128x128xf32>
    %2 = tpu.matmul %1, %0, %cst {dimension_numbers = #tpu.dot_dimension_numbers<[1], [0], [0], [1], [0, 0, 1, 1], [], []>} : vector<128x1xf32>, vector<1x128xf32>, vector<128x128xf32> -> vector<128x128xf32>
    %c0_3 = arith.constant 0 : index
    %c0_4 = arith.constant 0 : index
    %3 = vector.load %arg3[%c0_3, %c0_4] : memref<128x1xf32, #tpu.memory_space<vmem>>, vector<128x1xf32>
    %4 = vector.broadcast %3 : vector<128x1xf32> to vector<128x128xf32>
    %5 = arith.addf %2, %4 : vector<128x128xf32>
    %cst_5 = arith.constant 0.000000e+00 : f32
    %6 = vector.broadcast %cst_5 : f32 to vector<128x128xf32>
    %7 = arith.maximumf %5, %6 : vector<128x128xf32>
    %8 = arith.truncf %7 : vector<128x128xf32> to vector<128x128xbf16>
    %c0_6 = arith.constant 0 : index
    %c0_7 = arith.constant 0 : index
    %9 = vector.load %arg4[%c0_6, %c0_7] : memref<128x128xbf16, #tpu.memory_space<vmem>>, vector<128x128xbf16>
    %cst_8 = arith.constant dense<0.000000e+00> : vector<128x128xf32>
    %10 = tpu.matmul %9, %8, %cst_8 {dimension_numbers = #tpu.dot_dimension_numbers<[1], [0], [0], [1], [0, 0, 1, 1], [], []>} : vector<128x128xbf16>, vector<128x128xbf16>, vector<128x128xf32> -> vector<128x128xf32>
    %c0_9 = arith.constant 0 : index
    %c0_10 = arith.constant 0 : index
    %11 = vector.load %arg5[%c0_9, %c0_10] : memref<128x1xf32, #tpu.memory_space<vmem>>, vector<128x1xf32>
    %12 = vector.broadcast %11 : vector<128x1xf32> to vector<128x128xf32>
    %13 = arith.addf %10, %12 : vector<128x128xf32>
    %cst_11 = arith.constant 0.000000e+00 : f32
    %14 = vector.broadcast %cst_11 : f32 to vector<128x128xf32>
    %15 = arith.maximumf %13, %14 : vector<128x128xf32>
    %c0_12 = arith.constant 0 : index
    %c0_13 = arith.constant 0 : index
    %16 = vector.load %arg6[%c0_12, %c0_13] : memref<1x128xf32, #tpu.memory_space<vmem>>, vector<1x128xf32>
    %cst_14 = arith.constant dense<0.000000e+00> : vector<1x128xf32>
    %17 = tpu.matmul %16, %15, %cst_14 {dimension_numbers = #tpu.dot_dimension_numbers<[1], [0], [0], [1], [0, 0, 1, 1], [], []>} : vector<1x128xf32>, vector<128x128xf32>, vector<1x128xf32> -> vector<1x128xf32>
    %c0_15 = arith.constant 0 : index
    %c0_16 = arith.constant 0 : index
    %18 = vector.load %arg7[%c0_15, %c0_16] : memref<1x1xf32, #tpu.memory_space<vmem>>, vector<1x1xf32>
    %19 = vector.broadcast %18 : vector<1x1xf32> to vector<1x128xf32>
    %20 = arith.addf %17, %19 : vector<1x128xf32>
    %c0_17 = arith.constant 0 : index
    %c0_18 = arith.constant 0 : index
    %21 = vector.load %arg8[%c0_17, %c0_18] : memref<1x128xf32, #tpu.memory_space<vmem>>, vector<1x128xf32>
    tpu.vector_store %arg8[%c0_17, %c0_18], %20 {strides = array<i32>} : memref<1x128xf32, #tpu.memory_space<vmem>>, vector<1x128xf32>,
    return
  }
  func.func @transform_0(%arg0: i32) -> (i32, i32) {
    %c0_i32 = arith.constant 0 : i32
    %c0_i32_0 = arith.constant 0 : i32
    return %c0_i32, %arg0 : i32, i32
  }
  func.func @transform_1(%arg0: i32) -> (i32, i32) {
    %c0_i32 = arith.constant 0 : i32
    %c0_i32_0 = arith.constant 0 : i32
    %c0_i32_1 = arith.constant 0 : i32
    return %c0_i32, %c0_i32_0 : i32, i32
  }
  func.func @transform_2(%arg0: i32) -> (i32, i32) {
    %c0_i32 = arith.constant 0 : i32
    %c0_i32_0 = arith.constant 0 : i32
    %c0_i32_1 = arith.constant 0 : i32
    return %c0_i32, %c0_i32_0 : i32, i32
  }
  func.func @transform_3(%arg0: i32) -> (i32, i32) {
    %c0_i32 = arith.constant 0 : i32
    %c0_i32_0 = arith.constant 0 : i32
    %c0_i32_1 = arith.constant 0 : i32
    return %c0_i32, %c0_i32_0 : i32, i32
  }
  func.func @transform_4(%arg0: i32) -> (i32, i32) {
    %c0_i32 = arith.constant 0 : i32
    %c0_i32_0 = arith.constant 0 : i32
    %c0_i32_1 = arith.constant 0 : i32
    return %c0_i32, %c0_i32_0 : i32, i32
  }
  func.func @transform_5(%arg0: i32) -> (i32, i32) {
    %c0_i32 = arith.constant 0 : i32
    %c0_i32_0 = arith.constant 0 : i32
    %c0_i32_1 = arith.constant 0 : i32
    return %c0_i32, %c0_i32_0 : i32, i32
  }
  func.func @transform_6(%arg0: i32) -> (i32, i32) {
    %c0_i32 = arith.constant 0 : i32
    %c0_i32_0 = arith.constant 0 : i32
    %c0_i32_1 = arith.constant 0 : i32
    return %c0_i32, %c0_i32_0 : i32, i32
  }
  func.func @transform_7(%arg0: i32) -> (i32, i32) {
    %c0_i32 = arith.constant 0 : i32
    %c0_i32_0 = arith.constant 0 : i32
    return %c0_i32, %arg0 : i32, i32
  }
}

</mosaic_0001>

<llo_original>
// kernel: net_forward.1
$region0: #{net_forward.1}
  #allocation0 [shape = 'u32[]', space=smem, size = 0x4, offset = 0x4, fixed_abs, tag = 'smem constant byte address 0x4 - core index']
  #allocation1 [shape = 'u32[144,128]{1,0:T(1,128)}', space=vmem, size = 0x12000, scoped, tag = 'internal scratch']
  #allocation2 [shape = 'f32[1,1]{1,0:T(1,128)S(1)}', space=vmem, size = 0x200, scoped, tag = 'scoped memory for net_forward.1']
  %s0 = inlined_call_operand.vmem [shape: f32[1,128], index: 0, kind: input, shape index: {}]
  %s1 = inlined_call_operand.vmem [shape: f32[128,1], index: 1, kind: input, shape index: {}]
  %s2 = inlined_call_operand.vmem [shape: f32[128,1], index: 2, kind: input, shape index: {}]
  %s3 = inlined_call_operand.vmem [shape: bf16[128,128], index: 3, kind: input, shape index: {}]
  %s4 = inlined_call_operand.vmem [shape: f32[128,1], index: 4, kind: input, shape index: {}]
  %s5 = inlined_call_operand.vmem [shape: f32[1,128], index: 5, kind: input, shape index: {}]
  %s6 = inlined_call_operand.<no memory space> [shape: f32[1,1], index: 6, kind: input, shape index: {}]
  %s7 = inlined_call_operand.vmem [shape: f32[1,128], index: 7, kind: output, shape index: {}]
  %s8 = sld [smem:[#allocation0]]
  $region38: #{net_forward.1} parent=0
    _
  %s10 = ssub.s32 1, %s8
  %s11 = scalar_select 0, %s10, %s8
  %v12 = vstv %s6
  %13 = vst [vmem:[#allocation2] sm:$0x1] %v12
  // Predicated region
  $region2: #{net_forward.1} parent=0 // pred_check
    _
  $region3: #{net_forward.1} parent=0 // pred_check_branch
    %15 = sbr.rel (0) target = $region5
  $region4: #{net_forward.1} parent=0 // pred_region
    _
  $region5: #{net_forward.1} parent=0 // pred_fallthru
    _
  // Predicated region
  $region6: #{net_forward.1} parent=0 // pred_check
    _
  $region7: #{net_forward.1} parent=0 // pred_check_branch
    %17 = sbr.rel (0) target = $region9
  $region8: #{net_forward.1} parent=0 // pred_region
    _
  $region9: #{net_forward.1} parent=0 // pred_fallthru
    _
  // Predicated region
  $region10: #{net_forward.1} parent=0 // pred_check
    _
  $region11: #{net_forward.1} parent=0 // pred_check_branch
    %19 = sbr.rel (0) target = $region13
  $region12: #{net_forward.1} parent=0 // pred_region
    _
  $region13: #{net_forward.1} parent=0 // pred_fallthru
    _
  // Predicated region
  $region14: #{net_forward.1} parent=0 // pred_check
    _
  $region15: #{net_forward.1} parent=0 // pred_check_branch
    %21 = sbr.rel (0) target = $region17
  $region16: #{net_forward.1} parent=0 // pred_region
    _
  $region17: #{net_forward.1} parent=0 // pred_fallthru
    _
  // Predicated region
  $region18: #{net_forward.1} parent=0 // pred_check
    _
  $region19: #{net_forward.1} parent=0 // pred_check_branch
    %23 = sbr.rel (0) target = $region21
  $region20: #{net_forward.1} parent=0 // pred_region
    _
  $region21: #{net_forward.1} parent=0 // pred_fallthru
    _
  // Predicated region
  $region22: #{net_forward.1} parent=0 // pred_check
    _
  $region23: #{net_forward.1} parent=0 // pred_check_branch
    %25 = sbr.rel (0) target = $region25
  $region24: #{net_forward.1} parent=0 // pred_region
    _
  $region25: #{net_forward.1} parent=0 // pred_fallthru
    _
  // Predicated region
  $region26: #{net_forward.1} parent=0 // pred_check
    _
  $region27: #{net_forward.1} parent=0 // pred_check_branch
    %27 = sbr.rel (0) target = $region29
  $region28: #{net_forward.1} parent=0 // pred_region
    _
  $region29: #{net_forward.1} parent=0 // pred_fallthru
    _
  %v29 = vld [vmem:[%s0] sm:$0x1]
  %v30 = vld [vmem:[%s1] sm:$0xff]
  %v31 = vld [vmem:[%s1 + $0x8] sm:$0xff]
  %v32 = vld [vmem:[%s1 + $0x10] sm:$0xff]
  %v33 = vld [vmem:[%s1 + $0x18] sm:$0xff]
  %v34 = vld [vmem:[%s1 + $0x20] sm:$0xff]
  %v35 = vld [vmem:[%s1 + $0x28] sm:$0xff]
  %v36 = vld [vmem:[%s1 + $0x30] sm:$0xff]
  %v37 = vld [vmem:[%s1 + $0x38] sm:$0xff]
  %v38 = vld [vmem:[%s1 + $0x40] sm:$0xff]
  %v39 = vld [vmem:[%s1 + $0x48] sm:$0xff]
  %v40 = vld [vmem:[%s1 + $0x50] sm:$0xff]
  %v41 = vld [vmem:[%s1 + $0x58] sm:$0xff]
  %v42 = vld [vmem:[%s1 + $0x60] sm:$0xff]
  %v43 = vld [vmem:[%s1 + $0x68] sm:$0xff]
  %v44 = vld [vmem:[%s1 + $0x70] sm:$0xff]
  %v45 = vld [vmem:[%s1 + $0x78] sm:$0xff]
  %v46 = vld [vmem:[%s2] sm:$0xff]
  %v47 = vld [vmem:[%s2 + $0x8] sm:$0xff]
  %v48 = vld [vmem:[%s2 + $0x10] sm:$0xff]
  %v49 = vld [vmem:[%s2 + $0x18] sm:$0xff]
  %v50 = vld [vmem:[%s2 + $0x20] sm:$0xff]
  %v51 = vld [vmem:[%s2 + $0x28] sm:$0xff]
  %v52 = vld [vmem:[%s2 + $0x30] sm:$0xff]
  %v53 = vld [vmem:[%s2 + $0x38] sm:$0xff]
  %v54 = vld [vmem:[%s2 + $0x40] sm:$0xff]
  %v55 = vld [vmem:[%s2 + $0x48] sm:$0xff]
  %v56 = vld [vmem:[%s2 + $0x50] sm:$0xff]
  %v57 = vld [vmem:[%s2 + $0x58] sm:$0xff]
  %v58 = vld [vmem:[%s2 + $0x60] sm:$0xff]
  %v59 = vld [vmem:[%s2 + $0x68] sm:$0xff]
  %v60 = vld [vmem:[%s2 + $0x70] sm:$0xff]
  %v61 = vld [vmem:[%s2 + $0x78] sm:$0xff]
  %63 = vset.pattern.permute.xlu0 0
  %64 = vperm.xlu0 %63, %v46
  %v65 = vpop.permute.xlu0 %64
  %68 = vset.pattern.permute.xlu0 0
  %69 = vperm.xlu0 %68, %v47
  %v70 = vpop.permute.xlu0 %69
  %73 = vset.pattern.permute.xlu0 0
  %74 = vperm.xlu0 %73, %v48
  %v75 = vpop.permute.xlu0 %74
  %78 = vset.pattern.permute.xlu0 0
  %79 = vperm.xlu0 %78, %v49
  %v80 = vpop.permute.xlu0 %79
  %83 = vset.pattern.permute.xlu0 0
  %84 = vperm.xlu0 %83, %v50
  %v85 = vpop.permute.xlu0 %84
  %88 = vset.pattern.permute.xlu0 0
  %89 = vperm.xlu0 %88, %v51
  %v90 = vpop.permute.xlu0 %89
  %93 = vset.pattern.permute.xlu0 0
  %94 = vperm.xlu0 %93, %v52
  %v95 = vpop.permute.xlu0 %94
  %98 = vset.pattern.permute.xlu0 0
  %99 = vperm.xlu0 %98, %v53
  %v100 = vpop.permute.xlu0 %99
  %103 = vset.pattern.permute.xlu0 0
  %104 = vperm.xlu0 %103, %v54
  %v105 = vpop.permute.xlu0 %104
  %108 = vset.pattern.permute.xlu0 0
  %109 = vperm.xlu0 %108, %v55
  %v110 = vpop.permute.xlu0 %109
  %113 = vset.pattern.permute.xlu0 0
  %114 = vperm.xlu0 %113, %v56
  %v115 = vpop.permute.xlu0 %114
  %118 = vset.pattern.permute.xlu0 0
  %119 = vperm.xlu0 %118, %v57
  %v120 = vpop.permute.xlu0 %119
  %123 = vset.pattern.permute.xlu0 0
  %124 = vperm.xlu0 %123, %v58
  %v125 = vpop.permute.xlu0 %124
  %128 = vset.pattern.permute.xlu0 0
  %129 = vperm.xlu0 %128, %v59
  %v130 = vpop.permute.xlu0 %129
  %133 = vset.pattern.permute.xlu0 0
  %134 = vperm.xlu0 %133, %v60
  %v135 = vpop.permute.xlu0 %134
  %138 = vset.pattern.permute.xlu0 0
  %139 = vperm.xlu0 %138, %v61
  %v140 = vpop.permute.xlu0 %139
  %vm142 = vcmask 7168
  %v144 = vsel %vm142, %v30, 0
  %v147 = vsel %vm142, %v31, 0
  %v150 = vsel %vm142, %v32, 0
  %v153 = vsel %vm142, %v33, 0
  %v156 = vsel %vm142, %v34, 0
  %v159 = vsel %vm142, %v35, 0
  %v162 = vsel %vm142, %v36, 0
  %v165 = vsel %vm142, %v37, 0
  %v168 = vsel %vm142, %v38, 0
  %v171 = vsel %vm142, %v39, 0
  %v174 = vsel %vm142, %v40, 0
  %v177 = vsel %vm142, %v41, 0
  %v180 = vsel %vm142, %v42, 0
  %v183 = vsel %vm142, %v43, 0
  %v186 = vsel %vm142, %v44, 0
  %v189 = vsel %vm142, %v45, 0
  %vm191 = vcmask 1040384
  %v193 = vsel %vm191, %v29, 0
  %195 = vmatprep.subr.mxu0 0.0
  %196 = vmatpush1.msra.mxu0 0.0
  %197 = vmatprep.subr.mxu0 0.0
  %198 = vmatpush1.msra.mxu0 0.0
  %199 = vmatprep.subr.mxu0 0.0
  %200 = vmatpush1.msra.mxu0 0.0
  %201 = vmatprep.subr.mxu0 0.0
  %202 = vmatpush1.msra.mxu0 0.0
  %203 = vmatprep.subr.mxu0 0.0
  %204 = vmatpush1.msra.mxu0 0.0
  %205 = vmatprep.subr.mxu0 0.0
  %206 = vmatpush1.msra.mxu0 0.0
  %207 = vmatprep.subr.mxu0 0.0
  %208 = vmatpush1.msra.mxu0 0.0
  %209 = vmatprep.subr.mxu0 0.0
  %210 = vmatpush1.msra.mxu0 0.0
  %211 = vmatprep.subr.mxu0 0.0
  %212 = vmatpush1.msra.mxu0 0.0
  %213 = vmatprep.subr.mxu0 0.0
  %214 = vmatpush1.msra.mxu0 0.0
  %215 = vmatprep.subr.mxu0 0.0
  %216 = vmatpush1.msra.mxu0 0.0
  %217 = vmatprep.subr.mxu0 0.0
  %218 = vmatpush1.msra.mxu0 0.0
  %219 = vmatprep.subr.mxu0 0.0
  %220 = vmatpush1.msra.mxu0 0.0
  %221 = vmatprep.subr.mxu0 0.0
  %222 = vmatpush1.msra.mxu0 0.0
  %223 = vmatprep.subr.mxu0 0.0
  %224 = vmatpush1.msra.mxu0 0.0
  %225 = vmatprep.subr.mxu0 0.0
  %226 = vmatpush1.msra.mxu0 %v193
  %227 = vmatprep.subr.mxu0 0.0
  %228 = vmatpush2.msra.mxu0 0.0
  %229 = vmatprep.subr.mxu0 0.0
  %230 = vmatpush2.msra.mxu0 0.0
  %231 = vmatprep.subr.mxu0 0.0
  %232 = vmatpush2.msra.mxu0 0.0
  %233 = vmatprep.subr.mxu0 0.0
  %234 = vmatpush2.msra.mxu0 0.0
  %235 = vmatprep.subr.mxu0 0.0
  %236 = vmatpush2.msra.mxu0 0.0
  %237 = vmatprep.subr.mxu0 0.0
  %238 = vmatpush2.msra.mxu0 0.0
  %239 = vmatprep.subr.mxu0 0.0
  %240 = vmatpush2.msra.mxu0 0.0
  %241 = vmatprep.subr.mxu0 0.0
  %242 = vmatpush2.msra.mxu0 0.0
  %243 = vmatprep.subr.mxu0 0.0
  %244 = vmatpush2.msra.mxu0 0.0
  %245 = vmatprep.subr.mxu0 0.0
  %246 = vmatpush2.msra.mxu0 0.0
  %247 = vmatprep.subr.mxu0 0.0
  %248 = vmatpush2.msra.mxu0 0.0
  %249 = vmatprep.subr.mxu0 0.0
  %250 = vmatpush2.msra.mxu0 0.0
  %251 = vmatprep.subr.mxu0 0.0
  %252 = vmatpush2.msra.mxu0 0.0
  %253 = vmatprep.subr.mxu0 0.0
  %254 = vmatpush2.msra.mxu0 0.0
  %255 = vmatprep.subr.mxu0 0.0
  %256 = vmatpush2.msra.mxu0 0.0
  %257 = vmatprep.subr.mxu0 0.0
  %258 = vmatpush2.msra.mxu0 0.0
  %259 = vmatprep.mubr.f32.mxu0 0.0
  %260 = vmatmul.mubr.f32.gmra.mxu0 %v144
  %v261 = vpop.f32.mrf.mxu0
  %v262 = vadd.f32 %v65, %v261
  %v263 = vpop.f32.mrf.mxu0
  %264 = vmatprep.mubr.f32.mxu0 0.0
  %265 = vmatmul.mubr.f32.gmra.mxu0 %v147
  %v266 = vpop.f32.mrf.mxu0
  %v267 = vadd.f32 %v70, %v266
  %v268 = vpop.f32.mrf.mxu0
  %269 = vmatprep.mubr.f32.mxu0 0.0
  %270 = vmatmul.mubr.f32.gmra.mxu0 %v150
  %v271 = vpop.f32.mrf.mxu0
  %v272 = vadd.f32 %v75, %v271
  %v273 = vpop.f32.mrf.mxu0
  %274 = vmatprep.mubr.f32.mxu0 0.0
  %275 = vmatmul.mubr.f32.gmra.mxu0 %v153
  %v276 = vpop.f32.mrf.mxu0
  %v277 = vadd.f32 %v80, %v276
  %v278 = vpop.f32.mrf.mxu0
  %279 = vmatprep.mubr.f32.mxu0 0.0
  %280 = vmatmul.mubr.f32.gmra.mxu0 %v156
  %v281 = vpop.f32.mrf.mxu0
  %v282 = vadd.f32 %v85, %v281
  %v283 = vpop.f32.mrf.mxu0
  %284 = vmatprep.mubr.f32.mxu0 0.0
  %285 = vmatmul.mubr.f32.gmra.mxu0 %v159
  %v286 = vpop.f32.mrf.mxu0
  %v287 = vadd.f32 %v90, %v286
  %v288 = vpop.f32.mrf.mxu0
  %289 = vmatprep.mubr.f32.mxu0 0.0
  %290 = vmatmul.mubr.f32.gmra.mxu0 %v162
  %v291 = vpop.f32.mrf.mxu0
  %v292 = vadd.f32 %v95, %v291
  %v293 = vpop.f32.mrf.mxu0
  %294 = vmatprep.mubr.f32.mxu0 0.0
  %295 = vmatmul.mubr.f32.gmra.mxu0 %v165
  %v296 = vpop.f32.mrf.mxu0
  %v297 = vadd.f32 %v100, %v296
  %v298 = vpop.f32.mrf.mxu0
  %299 = vmatprep.mubr.f32.mxu0 0.0
  %300 = vmatmul.mubr.f32.gmra.mxu0 %v168
  %v301 = vpop.f32.mrf.mxu0
  %v302 = vadd.f32 %v105, %v301
  %v303 = vpop.f32.mrf.mxu0
  %304 = vmatprep.mubr.f32.mxu0 0.0
  %305 = vmatmul.mubr.f32.gmra.mxu0 %v171
  %v306 = vpop.f32.mrf.mxu0
  %v307 = vadd.f32 %v110, %v306
  %v308 = vpop.f32.mrf.mxu0
  %309 = vmatprep.mubr.f32.mxu0 0.0
  %310 = vmatmul.mubr.f32.gmra.mxu0 %v174
  %v311 = vpop.f32.mrf.mxu0
  %v312 = vadd.f32 %v115, %v311
  %v313 = vpop.f32.mrf.mxu0
  %314 = vmatprep.mubr.f32.mxu0 0.0
  %315 = vmatmul.mubr.f32.gmra.mxu0 %v177
  %v316 = vpop.f32.mrf.mxu0
  %v317 = vadd.f32 %v120, %v316
  %v318 = vpop.f32.mrf.mxu0
  %319 = vmatprep.mubr.f32.mxu0 0.0
  %320 = vmatmul.mubr.f32.gmra.mxu0 %v180
  %v321 = vpop.f32.mrf.mxu0
  %v322 = vadd.f32 %v125, %v321
  %v323 = vpop.f32.mrf.mxu0
  %324 = vmatprep.mubr.f32.mxu0 0.0
  %325 = vmatmul.mubr.f32.gmra.mxu0 %v183
  %v326 = vpop.f32.mrf.mxu0
  %v327 = vadd.f32 %v130, %v326
  %v328 = vpop.f32.mrf.mxu0
  %329 = vmatprep.mubr.f32.mxu0 0.0
  %330 = vmatmul.mubr.f32.gmra.mxu0 %v186
  %v331 = vpop.f32.mrf.mxu0
  %v332 = vadd.f32 %v135, %v331
  %v333 = vpop.f32.mrf.mxu0
  %334 = vmatprep.mubr.f32.mxu0 0.0
  %335 = vmatmul.mubr.f32.gmra.mxu0 %v189
  %v336 = vpop.f32.mrf.mxu0
  %v337 = vadd.f32 %v140, %v336
  %v338 = vpop.f32.mrf.mxu0
  %339 = vdwg.mxu0
  %v340 = vmax.f32 %v262, 0.0
  %v341 = vmax.f32 %v267, 0.0
  %v342 = vmax.f32 %v272, 0.0
  %v343 = vmax.f32 %v277, 0.0
  %v344 = vmax.f32 %v282, 0.0
  %v345 = vmax.f32 %v287, 0.0
  %v346 = vmax.f32 %v292, 0.0
  %v347 = vmax.f32 %v297, 0.0
  %v348 = vmax.f32 %v302, 0.0
  %v349 = vmax.f32 %v307, 0.0
  %v350 = vmax.f32 %v312, 0.0
  %v351 = vmax.f32 %v317, 0.0
  %v352 = vmax.f32 %v322, 0.0
  %v353 = vmax.f32 %v327, 0.0
  %v354 = vmax.f32 %v332, 0.0
  %v355 = vmax.f32 %v337, 0.0
  %v356 = vpack.c.bf16 %v341, %v340
  %v357 = vpack.c.bf16 %v343, %v342
  %v358 = vpack.c.bf16 %v345, %v344
  %v359 = vpack.c.bf16 %v347, %v346
  %v360 = vpack.c.bf16 %v349, %v348
  %v361 = vpack.c.bf16 %v351, %v350
  %v362 = vpack.c.bf16 %v353, %v352
  %v363 = vpack.c.bf16 %v355, %v354
  %v364 = vld [vmem:[%s3] sm:$0xf]
  %v365 = vld [vmem:[%s3 + $0x4] sm:$0xf]
  %v366 = vld [vmem:[%s3 + $0x8] sm:$0xf]
  %v367 = vld [vmem:[%s3 + $0xc] sm:$0xf]
  %v368 = vld [vmem:[%s3 + $0x10] sm:$0xf]
  %v369 = vld [vmem:[%s3 + $0x14] sm:$0xf]
  %v370 = vld [vmem:[%s3 + $0x18] sm:$0xf]
  %v371 = vld [vmem:[%s3 + $0x1c] sm:$0xf]
  %v372 = vld [vmem:[%s3 + $0x20] sm:$0xf]
  %v373 = vld [vmem:[%s3 + $0x24] sm:$0xf]
  %v374 = vld [vmem:[%s3 + $0x28] sm:$0xf]
  %v375 = vld [vmem:[%s3 + $0x2c] sm:$0xf]
  %v376 = vld [vmem:[%s3 + $0x30] sm:$0xf]
  %v377 = vld [vmem:[%s3 + $0x34] sm:$0xf]
  %v378 = vld [vmem:[%s3 + $0x38] sm:$0xf]
  %v379 = vld [vmem:[%s3 + $0x3c] sm:$0xf]
  %v380 = vld [vmem:[%s4] sm:$0xff]
  %v381 = vld [vmem:[%s4 + $0x8] sm:$0xff]
  %v382 = vld [vmem:[%s4 + $0x10] sm:$0xff]
  %v383 = vld [vmem:[%s4 + $0x18] sm:$0xff]
  %v384 = vld [vmem:[%s4 + $0x20] sm:$0xff]
  %v385 = vld [vmem:[%s4 + $0x28] sm:$0xff]
  %v386 = vld [vmem:[%s4 + $0x30] sm:$0xff]
  %v387 = vld [vmem:[%s4 + $0x38] sm:$0xff]
  %v388 = vld [vmem:[%s4 + $0x40] sm:$0xff]
  %v389 = vld [vmem:[%s4 + $0x48] sm:$0xff]
  %v390 = vld [vmem:[%s4 + $0x50] sm:$0xff]
  %v391 = vld [vmem:[%s4 + $0x58] sm:$0xff]
  %v392 = vld [vmem:[%s4 + $0x60] sm:$0xff]
  %v393 = vld [vmem:[%s4 + $0x68] sm:$0xff]
  %v394 = vld [vmem:[%s4 + $0x70] sm:$0xff]
  %v395 = vld [vmem:[%s4 + $0x78] sm:$0xff]
  %397 = vset.pattern.permute.xlu0 0
  %398 = vperm.xlu0 %397, %v380
  %v399 = vpop.permute.xlu0 %398
  %402 = vset.pattern.permute.xlu0 0
  %403 = vperm.xlu0 %402, %v381
  %v404 = vpop.permute.xlu0 %403
  %407 = vset.pattern.permute.xlu0 0
  %408 = vperm.xlu0 %407, %v382
  %v409 = vpop.permute.xlu0 %408
  %412 = vset.pattern.permute.xlu0 0
  %413 = vperm.xlu0 %412, %v383
  %v414 = vpop.permute.xlu0 %413
  %417 = vset.pattern.permute.xlu0 0
  %418 = vperm.xlu0 %417, %v384
  %v419 = vpop.permute.xlu0 %418
  %422 = vset.pattern.permute.xlu0 0
  %423 = vperm.xlu0 %422, %v385
  %v424 = vpop.permute.xlu0 %423
  %427 = vset.pattern.permute.xlu0 0
  %428 = vperm.xlu0 %427, %v386
  %v429 = vpop.permute.xlu0 %428
  %432 = vset.pattern.permute.xlu0 0
  %433 = vperm.xlu0 %432, %v387
  %v434 = vpop.permute.xlu0 %433
  %437 = vset.pattern.permute.xlu0 0
  %438 = vperm.xlu0 %437, %v388
  %v439 = vpop.permute.xlu0 %438
  %442 = vset.pattern.permute.xlu0 0
  %443 = vperm.xlu0 %442, %v389
  %v444 = vpop.permute.xlu0 %443
  %447 = vset.pattern.permute.xlu0 0
  %448 = vperm.xlu0 %447, %v390
  %v449 = vpop.permute.xlu0 %448
  %452 = vset.pattern.permute.xlu0 0
  %453 = vperm.xlu0 %452, %v391
  %v454 = vpop.permute.xlu0 %453
  %457 = vset.pattern.permute.xlu0 0
  %458 = vperm.xlu0 %457, %v392
  %v459 = vpop.permute.xlu0 %458
  %462 = vset.pattern.permute.xlu0 0
  %463 = vperm.xlu0 %462, %v393
  %v464 = vpop.permute.xlu0 %463
  %467 = vset.pattern.permute.xlu0 0
  %468 = vperm.xlu0 %467, %v394
  %v469 = vpop.permute.xlu0 %468
  %472 = vset.pattern.permute.xlu0 0
  %473 = vperm.xlu0 %472, %v395
  %v474 = vpop.permute.xlu0 %473
  %v492 = vunpack.c.l.b16 %v364
  %v493 = vunpack.c.l.b16 %v365
  %v494 = vunpack.c.l.b16 %v366
  %v495 = vunpack.c.l.b16 %v367
  %v496 = vunpack.c.l.b16 %v368
  %v497 = vunpack.c.l.b16 %v369
  %v498 = vunpack.c.l.b16 %v370
  %v499 = vunpack.c.l.b16 %v371
  %v500 = vunpack.c.l.b16 %v372
  %v501 = vunpack.c.l.b16 %v373
  %v502 = vunpack.c.l.b16 %v374
  %v503 = vunpack.c.l.b16 %v375
  %v504 = vunpack.c.l.b16 %v376
  %v505 = vunpack.c.l.b16 %v377
  %v506 = vunpack.c.l.b16 %v378
  %v507 = vunpack.c.l.b16 %v379
  %v508 = vpack.c.b16 %v493, %v492
  %v509 = vpack.c.b16 %v495, %v494
  %v510 = vpack.c.b16 %v497, %v496
  %v511 = vpack.c.b16 %v499, %v498
  %v512 = vpack.c.b16 %v501, %v500
  %v513 = vpack.c.b16 %v503, %v502
  %v514 = vpack.c.b16 %v505, %v504
  %v515 = vpack.c.b16 %v507, %v506
  %524 = vmatprep.subr.bf16.mxu0 0
  %525 = vmatpush1.bf16.msra.mxu0 %v363
  %526 = vmatprep.subr.bf16.mxu0 0
  %527 = vmatpush1.bf16.msra.mxu0 %v362
  %528 = vmatprep.subr.bf16.mxu0 0
  %529 = vmatpush1.bf16.msra.mxu0 %v361
  %530 = vmatprep.subr.bf16.mxu0 0
  %531 = vmatpush1.bf16.msra.mxu0 %v360
  %532 = vmatprep.subr.bf16.mxu0 0
  %533 = vmatpush1.bf16.msra.mxu0 %v359
  %534 = vmatprep.subr.bf16.mxu0 0
  %535 = vmatpush1.bf16.msra.mxu0 %v358
  %536 = vmatprep.subr.bf16.mxu0 0
  %537 = vmatpush1.bf16.msra.mxu0 %v357
  %538 = vmatprep.subr.bf16.mxu0 0
  %539 = vmatpush1.bf16.msra.mxu0 %v356
  %540 = vmatprep.subr.bf16.mxu0 0
  %541 = vmatpush2.bf16.msra.mxu0 0
  %542 = vmatprep.subr.bf16.mxu0 0
  %543 = vmatpush2.bf16.msra.mxu0 0
  %544 = vmatprep.subr.bf16.mxu0 0
  %545 = vmatpush2.bf16.msra.mxu0 0
  %546 = vmatprep.subr.bf16.mxu0 0
  %547 = vmatpush2.bf16.msra.mxu0 0
  %548 = vmatprep.subr.bf16.mxu0 0
  %549 = vmatpush2.bf16.msra.mxu0 0
  %550 = vmatprep.subr.bf16.mxu0 0
  %551 = vmatpush2.bf16.msra.mxu0 0
  %552 = vmatprep.subr.bf16.mxu0 0
  %553 = vmatpush2.bf16.msra.mxu0 0
  %554 = vmatprep.subr.bf16.mxu0 0
  %555 = vmatpush2.bf16.msra.mxu0 0
  %556 = vmatprep.mubr.bf16.mxu0 0
  %557 = vmatmul.mubr.bf16.gmra.mxu0 %v508
  %v558 = vpop.f32.mrf.mxu0
  %v559 = vadd.f32 %v399, %v558
  %v560 = vpop.f32.mrf.mxu0
  %v561 = vpop.f32.mrf.mxu0
  %v562 = vadd.f32 %v404, %v561
  %v563 = vpop.f32.mrf.mxu0
  %564 = vmatprep.mubr.bf16.mxu0 0
  %565 = vmatmul.mubr.bf16.gmra.mxu0 %v509
  %v566 = vpop.f32.mrf.mxu0
  %v567 = vadd.f32 %v409, %v566
  %v568 = vpop.f32.mrf.mxu0
  %v569 = vpop.f32.mrf.mxu0
  %v570 = vadd.f32 %v414, %v569
  %v571 = vpop.f32.mrf.mxu0
  %572 = vmatprep.mubr.bf16.mxu0 0
  %573 = vmatmul.mubr.bf16.gmra.mxu0 %v510
  %v574 = vpop.f32.mrf.mxu0
  %v575 = vadd.f32 %v419, %v574
  %v576 = vpop.f32.mrf.mxu0
  %v577 = vpop.f32.mrf.mxu0
  %v578 = vadd.f32 %v424, %v577
  %v579 = vpop.f32.mrf.mxu0
  %580 = vmatprep.mubr.bf16.mxu0 0
  %581 = vmatmul.mubr.bf16.gmra.mxu0 %v511
  %v582 = vpop.f32.mrf.mxu0
  %v583 = vadd.f32 %v429, %v582
  %v584 = vpop.f32.mrf.mxu0
  %v585 = vpop.f32.mrf.mxu0
  %v586 = vadd.f32 %v434, %v585
  %v587 = vpop.f32.mrf.mxu0
  %588 = vmatprep.mubr.bf16.mxu0 0
  %589 = vmatmul.mubr.bf16.gmra.mxu0 %v512
  %v590 = vpop.f32.mrf.mxu0
  %v591 = vadd.f32 %v439, %v590
  %v592 = vpop.f32.mrf.mxu0
  %v593 = vpop.f32.mrf.mxu0
  %v594 = vadd.f32 %v444, %v593
  %v595 = vpop.f32.mrf.mxu0
  %596 = vmatprep.mubr.bf16.mxu0 0
  %597 = vmatmul.mubr.bf16.gmra.mxu0 %v513
  %v598 = vpop.f32.mrf.mxu0
  %v599 = vadd.f32 %v449, %v598
  %v600 = vpop.f32.mrf.mxu0
  %v601 = vpop.f32.mrf.mxu0
  %v602 = vadd.f32 %v454, %v601
  %v603 = vpop.f32.mrf.mxu0
  %604 = vmatprep.mubr.bf16.mxu0 0
  %605 = vmatmul.mubr.bf16.gmra.mxu0 %v514
  %v606 = vpop.f32.mrf.mxu0
  %v607 = vadd.f32 %v459, %v606
  %v608 = vpop.f32.mrf.mxu0
  %v609 = vpop.f32.mrf.mxu0
  %v610 = vadd.f32 %v464, %v609
  %v611 = vpop.f32.mrf.mxu0
  %612 = vmatprep.mubr.bf16.mxu0 0
  %613 = vmatmul.mubr.bf16.gmra.mxu0 %v515
  %v614 = vpop.f32.mrf.mxu0
  %v615 = vadd.f32 %v469, %v614
  %v616 = vpop.f32.mrf.mxu0
  %v617 = vpop.f32.mrf.mxu0
  %v618 = vadd.f32 %v474, %v617
  %v619 = vpop.f32.mrf.mxu0
  %620 = vdwg.mxu0
  %v621 = vmax.f32 %v559, 0.0
  %v622 = vmax.f32 %v562, 0.0
  %v623 = vmax.f32 %v567, 0.0
  %v624 = vmax.f32 %v570, 0.0
  %v625 = vmax.f32 %v575, 0.0
  %v626 = vmax.f32 %v578, 0.0
  %v627 = vmax.f32 %v583, 0.0
  %v628 = vmax.f32 %v586, 0.0
  %v629 = vmax.f32 %v591, 0.0
  %v630 = vmax.f32 %v594, 0.0
  %v631 = vmax.f32 %v599, 0.0
  %v632 = vmax.f32 %v602, 0.0
  %v633 = vmax.f32 %v607, 0.0
  %v634 = vmax.f32 %v610, 0.0
  %v635 = vmax.f32 %v615, 0.0
  %v636 = vmax.f32 %v618, 0.0
  %v637 = vld [vmem:[%s5] sm:$0x1]
  %v638 = vld [vmem:[#allocation2] sm:$0x1]
  %640 = vset.pattern.permute.xlu0 0
  %641 = vperm.xlu0 %640, %v638
  %v642 = vpop.permute.xlu0 %641
  %v644 = vlaneseq
  %v645 = vshrl.u32 %v644, 7
  %v646 = vsub.s32 0, %v645
  %v647 = vrot.slane %v642, %v646
  %648 = vmatprep.subr.mxu0 0.0
  %649 = vmatpush1.msra.mxu0 %v636
  %650 = vmatprep.subr.mxu0 0.0
  %651 = vmatpush1.msra.mxu0 %v635
  %652 = vmatprep.subr.mxu0 0.0
  %653 = vmatpush1.msra.mxu0 %v634
  %654 = vmatprep.subr.mxu0 0.0
  %655 = vmatpush1.msra.mxu0 %v633
  %656 = vmatprep.subr.mxu0 0.0
  %657 = vmatpush1.msra.mxu0 %v632
  %658 = vmatprep.subr.mxu0 0.0
  %659 = vmatpush1.msra.mxu0 %v631
  %660 = vmatprep.subr.mxu0 0.0
  %661 = vmatpush1.msra.mxu0 %v630
  %662 = vmatprep.subr.mxu0 0.0
  %663 = vmatpush1.msra.mxu0 %v629
  %664 = vmatprep.subr.mxu0 0.0
  %665 = vmatpush1.msra.mxu0 %v628
  %666 = vmatprep.subr.mxu0 0.0
  %667 = vmatpush1.msra.mxu0 %v627
  %668 = vmatprep.subr.mxu0 0.0
  %669 = vmatpush1.msra.mxu0 %v626
  %670 = vmatprep.subr.mxu0 0.0
  %671 = vmatpush1.msra.mxu0 %v625
  %672 = vmatprep.subr.mxu0 0.0
  %673 = vmatpush1.msra.mxu0 %v624
  %674 = vmatprep.subr.mxu0 0.0
  %675 = vmatpush1.msra.mxu0 %v623
  %676 = vmatprep.subr.mxu0 0.0
  %677 = vmatpush1.msra.mxu0 %v622
  %678 = vmatprep.subr.mxu0 0.0
  %679 = vmatpush1.msra.mxu0 %v621
  %680 = vmatprep.subr.mxu0 0.0
  %681 = vmatpush2.msra.mxu0 0.0
  %682 = vmatprep.subr.mxu0 0.0
  %683 = vmatpush2.msra.mxu0 0.0
  %684 = vmatprep.subr.mxu0 0.0
  %685 = vmatpush2.msra.mxu0 0.0
  %686 = vmatprep.subr.mxu0 0.0
  %687 = vmatpush2.msra.mxu0 0.0
  %688 = vmatprep.subr.mxu0 0.0
  %689 = vmatpush2.msra.mxu0 0.0
  %690 = vmatprep.subr.mxu0 0.0
  %691 = vmatpush2.msra.mxu0 0.0
  %692 = vmatprep.subr.mxu0 0.0
  %693 = vmatpush2.msra.mxu0 0.0
  %694 = vmatprep.subr.mxu0 0.0
  %695 = vmatpush2.msra.mxu0 0.0
  %696 = vmatprep.subr.mxu0 0.0
  %697 = vmatpush2.msra.mxu0 0.0
  %698 = vmatprep.subr.mxu0 0.0
  %699 = vmatpush2.msra.mxu0 0.0
  %700 = vmatprep.subr.mxu0 0.0
  %701 = vmatpush2.msra.mxu0 0.0
  %702 = vmatprep.subr.mxu0 0.0
  %703 = vmatpush2.msra.mxu0 0.0
  %704 = vmatprep.subr.mxu0 0.0
  %705 = vmatpush2.msra.mxu0 0.0
  %706 = vmatprep.subr.mxu0 0.0
  %707 = vmatpush2.msra.mxu0 0.0
  %708 = vmatprep.subr.mxu0 0.0
  %709 = vmatpush2.msra.mxu0 0.0
  %710 = vmatprep.subr.mxu0 0.0
  %711 = vmatpush2.msra.mxu0 0.0
  %712 = vmatprep.mubr.f32.mxu0 0.0
  %713 = vmatmul.mubr.f32.gmra.mxu0 %v637
  %v714 = vpop.f32.mrf.mxu0
  %v715 = vadd.f32 %v647, %v714
  %v716 = vpop.f32.mrf.mxu0
  %717 = vdwg.mxu0
  %718 = vst [vmem:[%s7] sm:$0x1] %v715
  // Predicated region
  $region30: #{net_forward.1} parent=0 // pred_check
    _
  $region31: #{net_forward.1} parent=0 // pred_check_branch
    %720 = sbr.rel (0) target = $region33
  $region32: #{net_forward.1} parent=0 // pred_region
    _
  $region33: #{net_forward.1} parent=0 // pred_fallthru
    _
  // Predicated region
  $region34: #{net_forward.1} parent=0 // pred_check
    _
  $region35: #{net_forward.1} parent=0 // pred_check_branch
    %722 = sbr.rel (0) target = $region37
  $region36: #{net_forward.1} parent=0 // pred_region
    _
  $region37: #{net_forward.1} parent=0 // pred_fallthru
    _

</llo_original>
